<compile_context>
chip_gen: v6e
topology: v6e:2x2x1
jax: 0.10.0
libtpu: 0.0.40
codegen_flags: <defaults>
</compile_context>

<pallas_src>
import jax
import jax.numpy as jnp
from jax.experimental import pallas as pl
from jax.experimental.pallas import tpu as pltpu

LN_EPS = 1e-5  # PyTorch nn.LayerNorm default


def _round_up(v, m):
    return ((v + m - 1) // m) * m


def _lora_qkv_kernel(
    x_ref,       # (tm, C)    input rows (f32 or bf16)
    wqkv_ref,    # (C, 3C)    base qkv weight (mm dtype)
    bias_ref,    # (1, 3C)    b_qkv + beta-path LoRA bias (f32)
    acat_ref,    # (C, 3r)    [gamma_q*A_q | gamma_k*A_k | gamma_v*A_v] (f32)
    bblk_ref,    # (3r, 3C)   block-diag(B_q, B_k, B_v) (f32)
    out_ref,     # (tm, 3C)   output
):
    x = x_ref[...]
    xf = x.astype(jnp.float32)

    # Base qkv projection (MXU, f32 accumulate).
    base = jnp.dot(x.astype(wqkv_ref.dtype), wqkv_ref[...],
                   preferred_element_type=jnp.float32)

    # Shared LayerNorm statistics (gamma/beta already folded into acat/bias).
    mu = jnp.mean(xf, axis=-1, keepdims=True)
    xc = xf - mu
    var = jnp.mean(xc * xc, axis=-1, keepdims=True)
    # NOTE: rows of a masked partial tail block may hold stale/zero data; they
    # are row-local here and discarded by the masked output store.  var can be
    # 0 for such rows -- LN_EPS > 0 keeps rsqrt finite.
    x_hat = xc * jax.lax.rsqrt(var + LN_EPS)          # (tm, C), f32

    # Fused LoRA path, kept in f32 (rank is tiny, FLOPs ~ (r/C) of base).
    lo = jnp.dot(x_hat, acat_ref[...], preferred_element_type=jnp.float32)
    delta = jnp.dot(lo, bblk_ref[...], preferred_element_type=jnp.float32)

    # Single lane-dense store.
    out_ref[...] = (base + delta + bias_ref[...]).astype(out_ref.dtype)


def prepare_lora_qkv_params(params, *, mm_dtype=jnp.bfloat16):
    """Fold LN affine params into the LoRA path once; cache across calls.

    LN_i(x) @ A_i @ B_i == x_hat @ (gamma_i[:,None]*A_i) @ B_i + beta_i@A_i@B_i
    """
    C = params["w_qkv"].shape[0]
    r = params["a_q"].shape[1]

    def fold(gamma, beta, a, b):
        a_fold = gamma.reshape(C, 1).astype(jnp.float32) * a     # (C, r)
        bias_fold = (beta.reshape(1, C) @ a) @ b                 # (1, C)
        return a_fold, bias_fold

    aq, q_bias = fold(params["gamma_q"], params["beta_q"], params["a_q"], params["b_q"])
    ak, k_bias = fold(params["gamma_k"], params["beta_k"], params["a_k"], params["b_k"])
    av, v_bias = fold(params["gamma_v"], params["beta_v"], params["a_v"], params["b_v"])

    a_cat = jnp.concatenate([aq, ak, av], axis=1).astype(jnp.float32)   # (C, 3r)

    b_blk = jnp.zeros((3 * r, 3 * C), jnp.float32)                      # block-diag
    b_blk = b_blk.at[0:r, 0:C].set(params["b_q"])
    b_blk = b_blk.at[r:2 * r, C:2 * C].set(params["b_k"])
    b_blk = b_blk.at[2 * r:3 * r, 2 * C:3 * C].set(params["b_v"])

    b_total = (params["b_qkv"].reshape(1, 3 * C)
               + jnp.concatenate([q_bias, k_bias, v_bias], axis=1)).astype(jnp.float32)

    return {
        "w_qkv": params["w_qkv"].astype(mm_dtype),   # (C, 3C)  mm dtype
        "b_total": b_total,                          # (1, 3C)  f32
        "a_cat": a_cat,                              # (C, 3r)  f32
        "b_blk": b_blk,                              # (3r, 3C) f32
    }


def lora_qkv_forward(x, folded, *, tm=512, out_dtype=None):
    """x: (B, N, C) -> (B, N, 3C)."""
    B, N, C = x.shape
    M = B * N
    C3 = 3 * C
    R3 = folded["a_cat"].shape[1]
    out_dtype = x.dtype if out_dtype is None else out_dtype

    x2d = x.reshape(M, C)   # no padding, no output slice -> no extra HBM copies

    # Row tile: as large as requested but never larger than M (a block equal
    # to the full extent is always legal); otherwise a multiple of 8 and the
    # partial last block is masked by Pallas.
    if M <= tm:
        tm_eff = M
        grid = (1,)
    else:
        tm_eff = max(8, _round_up(int(tm), 8))
        grid = (pl.cdiv(M, tm_eff),)

    rows_spec = lambda shape: pl.BlockSpec(shape, lambda i: (i, 0))

    def weight_spec(shape, single_buffer):
        if single_buffer:
            # Grid-invariant operand (constant index_map): one VMEM buffer.
            return pl.BlockSpec(shape, lambda i: (0, 0),
                                pipeline_mode=pl.Buffered(1))
        return pl.BlockSpec(shape, lambda i: (0, 0))

    # ---- VMEM budget / cost estimate (per-generation cap with headroom) ----
    x_bytes = jnp.dtype(x.dtype).itemsize
    out_bytes = jnp.dtype(out_dtype).itemsize
    mm_bytes = jnp.dtype(folded["w_qkv"].dtype).itemsize
    weight_bytes = C * C3 * mm_bytes + C3 * 4 + C * R3 * 4 + R3 * C3 * 4
    stream_bytes = tm_eff * (C * x_bytes + C3 * out_bytes)
    try:
        vmem_cap = int(pltpu.get_tpu_info().vmem_capacity_bytes)
    except Exception:
        vmem_cap = 64 << 20            # v7x-safe fallback
    cap = max(vmem_cap - (16 << 20), 32 << 20)
    vmem_limit = int(min(max(2 * stream_bytes + 2 * weight_bytes + (4 << 20),
                             16 << 20), cap))

    flops = 2 * M * C * C3 + 2 * M * C * R3 + 2 * M * R3 * C3 + 6 * M * C
    bytes_accessed = M * C * x_bytes + M * C3 * out_bytes + weight_bytes
    cost = pl.CostEstimate(flops=int(flops), transcendentals=int(M),
                           bytes_accessed=int(bytes_accessed))

    def build(single_buffer_weights):
        in_specs = [
            rows_spec((tm_eff, C)),                                # x rows
            weight_spec((C, C3), single_buffer_weights),           # W_qkv
            weight_spec((1, C3), single_buffer_weights),           # folded bias
            weight_spec((C, R3), single_buffer_weights),           # A_cat
            weight_spec((R3, C3), single_buffer_weights),          # block-diag B
        ]
        return pl.pallas_call(
            _lora_qkv_kernel,
            out_shape=jax.ShapeDtypeStruct((M, C3), out_dtype),
            grid_spec=pltpu.PrefetchScalarGridSpec(
                num_scalar_prefetch=0,
                grid=grid,
                in_specs=in_specs,
                out_specs=rows_spec((tm_eff, C3)),
            ),
            compiler_params=pltpu.CompilerParams(
                dimension_semantics=("parallel",),
                vmem_limit_bytes=vmem_limit,
            ),
            cost_estimate=cost,
        )

    args = (x2d, folded["w_qkv"], folded["b_total"], folded["a_cat"],
            folded["b_blk"])
    try:
        out = build(True)(*args)
    except Exception:
        # Fallback if this Pallas build rejects Buffered(1) on inputs.
        out = build(False)(*args)

    return out.reshape(B, N, C3)


def make_params(key, dim, rank):
    """Deterministic synthetic parameters (shapes implied by the module)."""
    ks = jax.random.split(key, 10)
    scale = 0.05
    return {
        "w_qkv": scale * jax.random.normal(ks[0], (dim, 3 * dim), jnp.float32),
        "b_qkv": scale * jax.random.normal(ks[1], (1, 3 * dim), jnp.float32),
        "a_q": scale * jax.random.normal(ks[2], (dim, rank), jnp.float32),
        "b_q": scale * jax.random.normal(ks[3], (rank, dim), jnp.float32),
        "a_k": scale * jax.random.normal(ks[4], (dim, rank), jnp.float32),
        "b_k": scale * jax.random.normal(ks[5], (rank, dim), jnp.float32),
        "a_v": scale * jax.random.normal(ks[6], (dim, rank), jnp.float32),
        "b_v": scale * jax.random.normal(ks[7], (rank, dim), jnp.float32),
        # LayerNorm affine params (perturbed so the branches are nontrivial)
        "gamma_q": 1.0 + 0.01 * jax.random.normal(ks[8], (1, dim), jnp.float32),
        "beta_q": jnp.zeros((1, dim), jnp.float32),
        "gamma_k": jnp.ones((1, dim), jnp.float32),
        "beta_k": 0.01 * jax.random.normal(ks[9], (1, dim), jnp.float32),
        "gamma_v": jnp.ones((1, dim), jnp.float32),
        "beta_v": jnp.zeros((1, dim), jnp.float32),
    }


def reference_forward(x, p):
    """Pure-JAX f32 reference matching the PyTorch module semantics."""
    B, N, C = x.shape
    qkv = jnp.einsum("bnc,cd->bnd", x, p["w_qkv"]) + p["b_qkv"][0]

    def ln(x, g, b):
        mu = jnp.mean(x, axis=-1, keepdims=True)
        var = jnp.mean((x - mu) ** 2, axis=-1, keepdims=True)
        return (x - mu) / jnp.sqrt(var + LN_EPS) * g[0] + b[0]

    new_q = ln(x, p["gamma_q"], p["beta_q"]) @ p["a_q"] @ p["b_q"]
    new_k = ln(x, p["gamma_k"], p["beta_k"]) @ p["a_k"] @ p["b_k"]
    new_v = ln(x, p["gamma_v"], p["beta_v"]) @ p["a_v"] @ p["b_v"]
    qkv = qkv.at[:, :, :C].add(new_q)
    qkv = qkv.at[:, :, 2 * C:].add(new_v)   # [-dim:]
    qkv = qkv.at[:, :, C:2 * C].add(new_k)
    return qkv


if __name__ == "__main__":
    C, RANK = 32, 4
    key = jax.random.PRNGKey(0)
    kx, kp = jax.random.split(key)
    params = make_params(kp, C, RANK)

    # Fold once, reuse across calls (review item: cache wrapper-side folding).
    folded_f32 = prepare_lora_qkv_params(params, mm_dtype=jnp.float32)
    folded_bf16 = prepare_lora_qkv_params(params, mm_dtype=jnp.bfloat16)

    ok = True
    # Two shapes: one tile-aligned, one with M not a multiple of the tile.
    for (B, N) in [(2, 8), (2, 13)]:
        x = jax.random.normal(jax.random.fold_in(kx, N), (B, N, C), jnp.float32)
        ref = reference_forward(x, params)

        # f32 matmul path (tight tolerance vs reference).
        out_f32 = jax.block_until_ready(lora_qkv_forward(x, folded_f32))
        assert out_f32.shape == (B, N, 3 * C)
        ok &= bool(jnp.allclose(out_f32, ref, atol=1e-4, rtol=1e-4))

        # Same path with a small tile so the masked partial-tail block path
        # (grid > 1, M % tm != 0) is actually exercised.
        out_tiled = jax.block_until_ready(lora_qkv_forward(x, folded_f32, tm=16))
        ok &= bool(jnp.allclose(out_tiled, ref, atol=1e-4, rtol=1e-4))

        # bf16 weights (MXU-optimized default), f32 activations/output.
        out_bf16w = jax.block_until_ready(lora_qkv_forward(x, folded_bf16))
        ok &= bool(jnp.allclose(out_bf16w, ref, atol=2e-2, rtol=2e-2))

        # bf16 activations in, bf16 out: halves both dominant HBM streams.
        out_lp = jax.block_until_ready(
            lora_qkv_forward(x.astype(jnp.bfloat16), folded_bf16,
                             out_dtype=jnp.bfloat16))
        assert out_lp.dtype == jnp.bfloat16
        ok &= bool(jnp.allclose(out_lp.astype(jnp.float32), ref,
                                atol=5e-2, rtol=5e-2))

    assert ok, "mismatch vs. reference"
    print("KERNEL_OK")
</pallas_src>

<mosaic_0001>
module attributes {stable_mosaic.version = 11 : i64} {
  func.func @_lora_qkv_kernel(%arg0: i32, %arg1: memref<16x32xf32, #tpu.memory_space<vmem>>, %arg2: memref<32x96xf32, #tpu.memory_space<vmem>>, %arg3: memref<1x96xf32, #tpu.memory_space<vmem>>, %arg4: memref<32x12xf32, #tpu.memory_space<vmem>>, %arg5: memref<12x96xf32, #tpu.memory_space<vmem>>, %arg6: memref<16x96xf32, #tpu.memory_space<vmem>>) attributes {dimension_semantics = [#tpu.dimension_semantics<parallel>], iteration_bounds = array<i64: 1>, scalar_prefetch = 0 : i64, scratch_operands = 0 : i64, tpu.core_type = #tpu.core_type<tc>, window_params = [{transform_indices = @transform_0, window_bounds = array<i64: 16, 32>}, {pipeline_mode = #tpu.pipeline_mode<synchronous>, transform_indices = @transform_1, window_bounds = array<i64: 32, 96>}, {pipeline_mode = #tpu.pipeline_mode<synchronous>, transform_indices = @transform_2, window_bounds = array<i64: 1, 96>}, {pipeline_mode = #tpu.pipeline_mode<synchronous>, transform_indices = @transform_3, window_bounds = array<i64: 32, 12>}, {pipeline_mode = #tpu.pipeline_mode<synchronous>, transform_indices = @transform_4, window_bounds = array<i64: 12, 96>}, {transform_indices = @transform_5, window_bounds = array<i64: 16, 96>}]} {
    %c0 = arith.constant 0 : index
    %c0_0 = arith.constant 0 : index
    %0 = vector.load %arg1[%c0, %c0_0] : memref<16x32xf32, #tpu.memory_space<vmem>>, vector<16x32xf32>
    %c0_1 = arith.constant 0 : index
    %c0_2 = arith.constant 0 : index
    %1 = vector.load %arg2[%c0_1, %c0_2] : memref<32x96xf32, #tpu.memory_space<vmem>>, vector<32x96xf32>
    %cst = arith.constant dense<0.000000e+00> : vector<16x96xf32>
    %2 = tpu.matmul %0, %1, %cst {dimension_numbers = #tpu.dot_dimension_numbers<[1], [0], [0], [1], [0, 0, 1, 1], [], []>} : vector<16x32xf32>, vector<32x96xf32>, vector<16x96xf32> -> vector<16x96xf32>
    %cst_3 = arith.constant dense<0.000000e+00> : vector<16xf32>
    %3 = vector.multi_reduction <add>, %0, %cst_3 [1] : vector<16x32xf32> to vector<16xf32>
    %4 = vector.shape_cast %3 : vector<16xf32> to vector<16x1xf32>
    %cst_4 = arith.constant 3.200000e+01 : f32
    %5 = vector.broadcast %cst_4 : f32 to vector<16x1xf32>
    %6 = arith.divf %4, %5 : vector<16x1xf32>
    %7 = vector.broadcast %6 : vector<16x1xf32> to vector<16x32xf32>
    %8 = arith.subf %0, %7 : vector<16x32xf32>
    %9 = arith.mulf %8, %8 : vector<16x32xf32>
    %cst_5 = arith.constant dense<0.000000e+00> : vector<16xf32>
    %10 = vector.multi_reduction <add>, %9, %cst_5 [1] : vector<16x32xf32> to vector<16xf32>
    %11 = vector.shape_cast %10 : vector<16xf32> to vector<16x1xf32>
    %cst_6 = arith.constant 3.200000e+01 : f32
    %12 = vector.broadcast %cst_6 : f32 to vector<16x1xf32>
    %13 = arith.divf %11, %12 : vector<16x1xf32>
    %cst_7 = arith.constant 9.99999974E-6 : f32
    %14 = vector.broadcast %cst_7 : f32 to vector<16x1xf32>
    %15 = arith.addf %13, %14 : vector<16x1xf32>
    %16 = math.rsqrt %15 : vector<16x1xf32>
    %17 = vector.broadcast %16 : vector<16x1xf32> to vector<16x32xf32>
    %18 = arith.mulf %8, %17 : vector<16x32xf32>
    %c0_8 = arith.constant 0 : index
    %c0_9 = arith.constant 0 : index
    %19 = vector.load %arg4[%c0_8, %c0_9] : memref<32x12xf32, #tpu.memory_space<vmem>>, vector<32x12xf32>
    %cst_10 = arith.constant dense<0.000000e+00> : vector<16x12xf32>
    %20 = tpu.matmul %18, %19, %cst_10 {dimension_numbers = #tpu.dot_dimension_numbers<[1], [0], [0], [1], [0, 0, 1, 1], [], []>} : vector<16x32xf32>, vector<32x12xf32>, vector<16x12xf32> -> vector<16x12xf32>
    %c0_11 = arith.constant 0 : index
    %c0_12 = arith.constant 0 : index
    %21 = vector.load %arg5[%c0_11, %c0_12] : memref<12x96xf32, #tpu.memory_space<vmem>>, vector<12x96xf32>
    %cst_13 = arith.constant dense<0.000000e+00> : vector<16x96xf32>
    %22 = tpu.matmul %20, %21, %cst_13 {dimension_numbers = #tpu.dot_dimension_numbers<[1], [0], [0], [1], [0, 0, 1, 1], [], []>} : vector<16x12xf32>, vector<12x96xf32>, vector<16x96xf32> -> vector<16x96xf32>
    %23 = arith.addf %2, %22 : vector<16x96xf32>
    %c0_14 = arith.constant 0 : index
    %c0_15 = arith.constant 0 : index
    %24 = vector.load %arg3[%c0_14, %c0_15] : memref<1x96xf32, #tpu.memory_space<vmem>>, vector<1x96xf32>
    %25 = vector.broadcast %24 : vector<1x96xf32> to vector<16x96xf32>
    %26 = arith.addf %23, %25 : vector<16x96xf32>
    %c0_16 = arith.constant 0 : index
    %c0_17 = arith.constant 0 : index
    %27 = vector.load %arg6[%c0_16, %c0_17] : memref<16x96xf32, #tpu.memory_space<vmem>>, vector<16x96xf32>
    tpu.vector_store %arg6[%c0_16, %c0_17], %26 {strides = array<i32>} : memref<16x96xf32, #tpu.memory_space<vmem>>, vector<16x96xf32>,
    return
  }
  func.func @transform_0(%arg0: i32) -> (i32, i32) {
    %c0_i32 = arith.constant 0 : i32
    %c0_i32_0 = arith.constant 0 : i32
    return %arg0, %c0_i32 : i32, i32
  }
  func.func @transform_1(%arg0: i32) -> (i32, i32) {
    %c0_i32 = arith.constant 0 : i32
    %c0_i32_0 = arith.constant 0 : i32
    %c0_i32_1 = arith.constant 0 : i32
    return %c0_i32, %c0_i32_0 : i32, i32
  }
  func.func @transform_2(%arg0: i32) -> (i32, i32) {
    %c0_i32 = arith.constant 0 : i32
    %c0_i32_0 = arith.constant 0 : i32
    %c0_i32_1 = arith.constant 0 : i32
    return %c0_i32, %c0_i32_0 : i32, i32
  }
  func.func @transform_3(%arg0: i32) -> (i32, i32) {
    %c0_i32 = arith.constant 0 : i32
    %c0_i32_0 = arith.constant 0 : i32
    %c0_i32_1 = arith.constant 0 : i32
    return %c0_i32, %c0_i32_0 : i32, i32
  }
  func.func @transform_4(%arg0: i32) -> (i32, i32) {
    %c0_i32 = arith.constant 0 : i32
    %c0_i32_0 = arith.constant 0 : i32
    %c0_i32_1 = arith.constant 0 : i32
    return %c0_i32, %c0_i32_0 : i32, i32
  }
  func.func @transform_5(%arg0: i32) -> (i32, i32) {
    %c0_i32 = arith.constant 0 : i32
    %c0_i32_0 = arith.constant 0 : i32
    return %arg0, %c0_i32 : i32, i32
  }
}

module attributes {stable_mosaic.version = 11 : i64} {
  func.func @_lora_qkv_kernel(%arg0: i32, %arg1: memref<16x32xf32, #tpu.memory_space<vmem>>, %arg2: memref<32x96xf32, #tpu.memory_space<vmem>>, %arg3: memref<1x96xf32, #tpu.memory_space<vmem>>, %arg4: memref<32x12xf32, #tpu.memory_space<vmem>>, %arg5: memref<12x96xf32, #tpu.memory_space<vmem>>, %arg6: memref<16x96xf32, #tpu.memory_space<vmem>>) attributes {dimension_semantics = [#tpu.dimension_semantics<parallel>], iteration_bounds = array<i64: 1>, scalar_prefetch = 0 : i64, scratch_operands = 0 : i64, tpu.core_type = #tpu.core_type<tc>, window_params = [{transform_indices = @transform_0, window_bounds = array<i64: 16, 32>}, {pipeline_mode = #tpu.pipeline_mode<synchronous>, transform_indices = @transform_1, window_bounds = array<i64: 32, 96>}, {pipeline_mode = #tpu.pipeline_mode<synchronous>, transform_indices = @transform_2, window_bounds = array<i64: 1, 96>}, {pipeline_mode = #tpu.pipeline_mode<synchronous>, transform_indices = @transform_3, window_bounds = array<i64: 32, 12>}, {pipeline_mode = #tpu.pipeline_mode<synchronous>, transform_indices = @transform_4, window_bounds = array<i64: 12, 96>}, {transform_indices = @transform_5, window_bounds = array<i64: 16, 96>}]} {
    %c0 = arith.constant 0 : index
    %c0_0 = arith.constant 0 : index
    %0 = vector.load %arg1[%c0, %c0_0] : memref<16x32xf32, #tpu.memory_space<vmem>>, vector<16x32xf32>
    %c0_1 = arith.constant 0 : index
    %c0_2 = arith.constant 0 : index
    %1 = vector.load %arg2[%c0_1, %c0_2] : memref<32x96xf32, #tpu.memory_space<vmem>>, vector<32x96xf32>
    %cst = arith.constant dense<0.000000e+00> : vector<16x96xf32>
    %2 = tpu.matmul %0, %1, %cst {dimension_numbers = #tpu.dot_dimension_numbers<[1], [0], [0], [1], [0, 0, 1, 1], [], []>} : vector<16x32xf32>, vector<32x96xf32>, vector<16x96xf32> -> vector<16x96xf32>
    %cst_3 = arith.constant dense<0.000000e+00> : vector<16xf32>
    %3 = vector.multi_reduction <add>, %0, %cst_3 [1] : vector<16x32xf32> to vector<16xf32>
    %4 = vector.shape_cast %3 : vector<16xf32> to vector<16x1xf32>
    %cst_4 = arith.constant 3.200000e+01 : f32
    %5 = vector.broadcast %cst_4 : f32 to vector<16x1xf32>
    %6 = arith.divf %4, %5 : vector<16x1xf32>
    %7 = vector.broadcast %6 : vector<16x1xf32> to vector<16x32xf32>
    %8 = arith.subf %0, %7 : vector<16x32xf32>
    %9 = arith.mulf %8, %8 : vector<16x32xf32>
    %cst_5 = arith.constant dense<0.000000e+00> : vector<16xf32>
    %10 = vector.multi_reduction <add>, %9, %cst_5 [1] : vector<16x32xf32> to vector<16xf32>
    %11 = vector.shape_cast %10 : vector<16xf32> to vector<16x1xf32>
    %cst_6 = arith.constant 3.200000e+01 : f32
    %12 = vector.broadcast %cst_6 : f32 to vector<16x1xf32>
    %13 = arith.divf %11, %12 : vector<16x1xf32>
    %cst_7 = arith.constant 9.99999974E-6 : f32
    %14 = vector.broadcast %cst_7 : f32 to vector<16x1xf32>
    %15 = arith.addf %13, %14 : vector<16x1xf32>
    %16 = math.rsqrt %15 : vector<16x1xf32>
    %17 = vector.broadcast %16 : vector<16x1xf32> to vector<16x32xf32>
    %18 = arith.mulf %8, %17 : vector<16x32xf32>
    %c0_8 = arith.constant 0 : index
    %c0_9 = arith.constant 0 : index
    %19 = vector.load %arg4[%c0_8, %c0_9] : memref<32x12xf32, #tpu.memory_space<vmem>>, vector<32x12xf32>
    %cst_10 = arith.constant dense<0.000000e+00> : vector<16x12xf32>
    %20 = tpu.matmul %18, %19, %cst_10 {dimension_numbers = #tpu.dot_dimension_numbers<[1], [0], [0], [1], [0, 0, 1, 1], [], []>} : vector<16x32xf32>, vector<32x12xf32>, vector<16x12xf32> -> vector<16x12xf32>
    %c0_11 = arith.constant 0 : index
    %c0_12 = arith.constant 0 : index
    %21 = vector.load %arg5[%c0_11, %c0_12] : memref<12x96xf32, #tpu.memory_space<vmem>>, vector<12x96xf32>
    %cst_13 = arith.constant dense<0.000000e+00> : vector<16x96xf32>
    %22 = tpu.matmul %20, %21, %cst_13 {dimension_numbers = #tpu.dot_dimension_numbers<[1], [0], [0], [1], [0, 0, 1, 1], [], []>} : vector<16x12xf32>, vector<12x96xf32>, vector<16x96xf32> -> vector<16x96xf32>
    %23 = arith.addf %2, %22 : vector<16x96xf32>
    %c0_14 = arith.constant 0 : index
    %c0_15 = arith.constant 0 : index
    %24 = vector.load %arg3[%c0_14, %c0_15] : memref<1x96xf32, #tpu.memory_space<vmem>>, vector<1x96xf32>
    %25 = vector.broadcast %24 : vector<1x96xf32> to vector<16x96xf32>
    %26 = arith.addf %23, %25 : vector<16x96xf32>
    %c0_16 = arith.constant 0 : index
    %c0_17 = arith.constant 0 : index
    %27 = vector.load %arg6[%c0_16, %c0_17] : memref<16x96xf32, #tpu.memory_space<vmem>>, vector<16x96xf32>
    tpu.vector_store %arg6[%c0_16, %c0_17], %26 {strides = array<i32>} : memref<16x96xf32, #tpu.memory_space<vmem>>, vector<16x96xf32>,
    return
  }
  func.func @transform_0(%arg0: i32) -> (i32, i32) {
    %c0_i32 = arith.constant 0 : i32
    %c0_i32_0 = arith.constant 0 : i32
    return %arg0, %c0_i32 : i32, i32
  }
  func.func @transform_1(%arg0: i32) -> (i32, i32) {
    %c0_i32 = arith.constant 0 : i32
    %c0_i32_0 = arith.constant 0 : i32
    %c0_i32_1 = arith.constant 0 : i32
    return %c0_i32, %c0_i32_0 : i32, i32
  }
  func.func @transform_2(%arg0: i32) -> (i32, i32) {
    %c0_i32 = arith.constant 0 : i32
    %c0_i32_0 = arith.constant 0 : i32
    %c0_i32_1 = arith.constant 0 : i32
    return %c0_i32, %c0_i32_0 : i32, i32
  }
  func.func @transform_3(%arg0: i32) -> (i32, i32) {
    %c0_i32 = arith.constant 0 : i32
    %c0_i32_0 = arith.constant 0 : i32
    %c0_i32_1 = arith.constant 0 : i32
    return %c0_i32, %c0_i32_0 : i32, i32
  }
  func.func @transform_4(%arg0: i32) -> (i32, i32) {
    %c0_i32 = arith.constant 0 : i32
    %c0_i32_0 = arith.constant 0 : i32
    %c0_i32_1 = arith.constant 0 : i32
    return %c0_i32, %c0_i32_0 : i32, i32
  }
  func.func @transform_5(%arg0: i32) -> (i32, i32) {
    %c0_i32 = arith.constant 0 : i32
    %c0_i32_0 = arith.constant 0 : i32
    return %arg0, %c0_i32 : i32, i32
  }
}

</mosaic_0001>

<llo_original>
// kernel: tpu_custom_call.1
$region0: #{tpu_custom_call.1}
  #allocation0 [shape = 'u32[]', space=smem, size = 0x4, offset = 0x4, fixed_abs, tag = 'smem constant byte address 0x4 - core index']
  #allocation1 [shape = 'u32[144,128]{1,0:T(1,128)}', space=vmem, size = 0x12000, scoped, tag = 'internal scratch']
  %s0 = inlined_call_operand.vmem [shape: f32[16,32], index: 0, kind: input, shape index: {}]
  %s1 = inlined_call_operand.vmem [shape: f32[32,96], index: 1, kind: input, shape index: {}]
  %s2 = inlined_call_operand.vmem [shape: f32[1,96], index: 2, kind: input, shape index: {}]
  %s3 = inlined_call_operand.vmem [shape: f32[32,12], index: 3, kind: input, shape index: {}]
  %s4 = inlined_call_operand.hbm [shape: f32[12,96], index: 4, kind: input, shape index: {}]
  %s5 = inlined_call_operand.hbm [shape: f32[16,96], index: 5, kind: output, shape index: {}]
  %s6 = sld [smem:[#allocation0]]
  $region34: #{tpu_custom_call.1} parent=0
    _
  %s8 = ssub.s32 1, %s6
  %s9 = scalar_select 0, %s8, %s6
  $region1: #{tpu_custom_call.1} parent=0
    #allocation2 [shape = 'u8[8192]{0}', space=vmem, size = 0x2000, scoped, tag = 'input window, operand 4, single buffered']
    #allocation3 [shape = 's32[1]{0}', space=sflag, size = 0x4, scoped, tag = 'scoped memory for tpu_custom_call.1']
    #allocation4 [shape = 's32[1]{0}', space=sflag, size = 0x4, scoped, tag = 'scoped memory for tpu_custom_call.1']
    #allocation5 [shape = 'u8[8192]{0}', space=vmem, size = 0x2000, scoped, tag = 'output window, operand 0, single buffered']
    %10 = vsyncpa [#allocation3], 0
    %11 = vsyncpa [#allocation4], 0
    // Predicated region
    $region2: #{tpu_custom_call.1} parent=1 // pred_check
      _
    $region3: #{tpu_custom_call.1} parent=1 // pred_check_branch
      %13 = sbr.rel (0) target = $region5
    $region4: #{tpu_custom_call.1} parent=1 // pred_region
      _
    $region5: #{tpu_custom_call.1} parent=1 // pred_fallthru
      _
    // Predicated region
    $region6: #{tpu_custom_call.1} parent=1 // pred_check
      _
    $region7: #{tpu_custom_call.1} parent=1 // pred_check_branch
      %15 = sbr.rel (0) target = $region9
    $region8: #{tpu_custom_call.1} parent=1 // pred_region
      _
    $region9: #{tpu_custom_call.1} parent=1 // pred_fallthru
      _
    // Predicated region
    $region10: #{tpu_custom_call.1} parent=1 // pred_check
      _
    $region11: #{tpu_custom_call.1} parent=1 // pred_check_branch
      %17 = sbr.rel (0) target = $region13
    $region12: #{tpu_custom_call.1} parent=1 // pred_region
      _
    $region13: #{tpu_custom_call.1} parent=1 // pred_fallthru
      _
    // Predicated region
    $region14: #{tpu_custom_call.1} parent=1 // pred_check
      _
    $region15: #{tpu_custom_call.1} parent=1 // pred_check_branch
      %19 = sbr.rel (0) target = $region17
    $region16: #{tpu_custom_call.1} parent=1 // pred_region
      _
    $region17: #{tpu_custom_call.1} parent=1 // pred_fallthru
      _
    // Predicated region
    $region18: #{tpu_custom_call.1} parent=1 // pred_check
      _
    $region19: #{tpu_custom_call.1} parent=1 // pred_check_branch
      %21 = sbr.rel (0) target = $region21
    $region20: #{tpu_custom_call.1} parent=1 // pred_region
      %s23 = ssub.s32 256, 256
      %24 = vsyncadd [#allocation3], %s23
      %s25 = sshll.u32 [#allocation2], 4
      %s26 = int_to_ptr.vmem [resolvable:$true] %s25
      %31 = dma.hbm_to_vmem [thread:$0]  %s4, 256, %s26, [#allocation3], 128, 128, 8
    $region21: #{tpu_custom_call.1} parent=1 // pred_fallthru
      _
    // Predicated region
    $region22: #{tpu_custom_call.1} parent=1 // pred_check
      _
    $region23: #{tpu_custom_call.1} parent=1 // pred_check_branch
      %33 = sbr.rel (0) target = $region25
    $region24: #{tpu_custom_call.1} parent=1 // pred_region
      %34 = dma.done [#allocation3], 256
    $region25: #{tpu_custom_call.1} parent=1 // pred_fallthru
      _
    %v35 = vld [vmem:[%s0] sm:$0xff]
    %v36 = vld [vmem:[%s0 + $0x8] sm:$0xff]
    %v37 = vld [vmem:[%s1] sm:$0xff]
    %v38 = vld [vmem:[%s1 + $0x8] sm:$0xff]
    %v39 = vld [vmem:[%s1 + $0x10] sm:$0xff]
    %v40 = vld [vmem:[%s1 + $0x18] sm:$0xff]
    %vm41 = vcmask 261120
    %v42 = vsel %vm41, %v35, 0.0
    %43 = vadd.xlane.f32.xlu0 %v42
    %v44 = vpop.xlane.xlu0 %43
    %v45 = vsel %vm41, %v36, 0.0
    %46 = vadd.xlane.f32.xlu0 %v45
    %v47 = vpop.xlane.xlu0 %46
    %v48 = vrcp.pop 32.0
    %v49 = vmul.f32 %v44, %v48
    %v50 = vmul.f32 %v47, %v48
    %v51 = vsub.f32 %v35, %v49
    %v52 = vsub.f32 %v36, %v50
    %v53 = vmul.f32 %v51, %v51
    %v54 = vmul.f32 %v52, %v52
    %v55 = vsel %vm41, %v53, 0.0
    %56 = vadd.xlane.f32.xlu0 %v55
    %v57 = vpop.xlane.xlu0 %56
    %v58 = vsel %vm41, %v54, 0.0
    %59 = vadd.xlane.f32.xlu0 %v58
    %v60 = vpop.xlane.xlu0 %59
    %v61 = vmul.f32 %v57, %v48
    %v62 = vmul.f32 %v60, %v48
    %v63 = vadd.f32 %v61, 1e-05
    %v64 = vadd.f32 %v62, 1e-05
    %v65 = vrsqrt.pop %v63
    %v66 = vrsqrt.pop %v64
    %v67 = vmul.f32 %v51, %v65
    %v68 = vmul.f32 %v52, %v66
    %v69 = vld [vmem:[%s3] sm:$0xff]
    %v70 = vld [vmem:[%s3 + $0x8] sm:$0xff]
    %v71 = vld [vmem:[%s3 + $0x10] sm:$0xff]
    %v72 = vld [vmem:[%s3 + $0x18] sm:$0xff]
    %v74 = vsel %vm41, %v67, 0
    %v77 = vsel %vm41, %v68, 0
    %79 = vmatprep.subr.mxu0 0.0
    %80 = vmatpush1.msra.mxu0 0.0
    %81 = vmatprep.subr.mxu0 0.0
    %82 = vmatpush1.msra.mxu0 0.0
    %83 = vmatprep.subr.mxu0 0.0
    %84 = vmatpush1.msra.mxu0 0.0
    %85 = vmatprep.subr.mxu0 0.0
    %86 = vmatpush1.msra.mxu0 0.0
    %87 = vmatprep.subr.mxu0 0.0
    %88 = vmatpush1.msra.mxu0 0.0
    %89 = vmatprep.subr.mxu0 0.0
    %90 = vmatpush1.msra.mxu0 0.0
    %91 = vmatprep.subr.mxu0 0.0
    %92 = vmatpush1.msra.mxu0 0.0
    %93 = vmatprep.subr.mxu0 0.0
    %94 = vmatpush1.msra.mxu0 0.0
    %95 = vmatprep.subr.mxu0 0.0
    %96 = vmatpush1.msra.mxu0 0.0
    %97 = vmatprep.subr.mxu0 0.0
    %98 = vmatpush1.msra.mxu0 0.0
    %99 = vmatprep.subr.mxu0 0.0
    %100 = vmatpush1.msra.mxu0 0.0
    %101 = vmatprep.subr.mxu0 0.0
    %102 = vmatpush1.msra.mxu0 0.0
    %103 = vmatprep.subr.mxu0 0.0
    %104 = vmatpush1.msra.mxu0 %v72
    %105 = vmatprep.subr.mxu0 0.0
    %106 = vmatpush1.msra.mxu0 %v71
    %107 = vmatprep.subr.mxu0 0.0
    %108 = vmatpush1.msra.mxu0 %v70
    %109 = vmatprep.subr.mxu0 0.0
    %110 = vmatpush1.msra.mxu0 %v69
    %111 = vmatprep.subr.mxu0 0.0
    %112 = vmatpush2.msra.mxu0 0.0
    %113 = vmatprep.subr.mxu0 0.0
    %114 = vmatpush2.msra.mxu0 0.0
    %115 = vmatprep.subr.mxu0 0.0
    %116 = vmatpush2.msra.mxu0 0.0
    %117 = vmatprep.subr.mxu0 0.0
    %118 = vmatpush2.msra.mxu0 0.0
    %119 = vmatprep.subr.mxu0 0.0
    %120 = vmatpush2.msra.mxu0 0.0
    %121 = vmatprep.subr.mxu0 0.0
    %122 = vmatpush2.msra.mxu0 0.0
    %123 = vmatprep.subr.mxu0 0.0
    %124 = vmatpush2.msra.mxu0 0.0
    %125 = vmatprep.subr.mxu0 0.0
    %126 = vmatpush2.msra.mxu0 0.0
    %127 = vmatprep.subr.mxu0 0.0
    %128 = vmatpush2.msra.mxu0 0.0
    %129 = vmatprep.subr.mxu0 0.0
    %130 = vmatpush2.msra.mxu0 0.0
    %131 = vmatprep.subr.mxu0 0.0
    %132 = vmatpush2.msra.mxu0 0.0
    %133 = vmatprep.subr.mxu0 0.0
    %134 = vmatpush2.msra.mxu0 0.0
    %135 = vmatprep.subr.mxu0 0.0
    %136 = vmatpush2.msra.mxu0 0.0
    %137 = vmatprep.subr.mxu0 0.0
    %138 = vmatpush2.msra.mxu0 0.0
    %139 = vmatprep.subr.mxu0 0.0
    %140 = vmatpush2.msra.mxu0 0.0
    %141 = vmatprep.subr.mxu0 0.0
    %142 = vmatpush2.msra.mxu0 0.0
    %143 = vmatprep.mubr.f32.mxu0 0.0
    %144 = vmatmul.mubr.f32.gmra.mxu0 %v74
    %v145 = vpop.f32.mrf.mxu0
    %v146 = vadd.f32 0.0, %v145
    %v147 = vpop.f32.mrf.mxu0
    %148 = vmatprep.mubr.f32.mxu0 0.0
    %149 = vmatmul.mubr.f32.gmra.mxu0 %v77
    %v150 = vpop.f32.mrf.mxu0
    %v151 = vadd.f32 0.0, %v150
    %v152 = vpop.f32.mrf.mxu0
    %153 = vdwg.mxu0
    %v154 = vld [vmem:[#allocation2] sm:$0xff]
    %v155 = vld [vmem:[#allocation2 + $0x8] sm:$0xf]
    %vm156 = vcmask 97280
    %v158 = vsel %vm156, %v146, 0
    %v161 = vsel %vm156, %v151, 0
    %vm163 = vcmask 1043456
    %v165 = vsel %vm163, %v155, 0
    %167 = vmatprep.subr.mxu0 0.0
    %168 = vmatpush1.msra.mxu0 0.0
    %169 = vmatprep.subr.mxu0 0.0
    %170 = vmatpush1.msra.mxu0 0.0
    %171 = vmatprep.subr.mxu0 0.0
    %172 = vmatpush1.msra.mxu0 0.0
    %173 = vmatprep.subr.mxu0 0.0
    %174 = vmatpush1.msra.mxu0 0.0
    %175 = vmatprep.subr.mxu0 0.0
    %176 = vmatpush1.msra.mxu0 0.0
    %177 = vmatprep.subr.mxu0 0.0
    %178 = vmatpush1.msra.mxu0 0.0
    %179 = vmatprep.subr.mxu0 0.0
    %180 = vmatpush1.msra.mxu0 0.0
    %181 = vmatprep.subr.mxu0 0.0
    %182 = vmatpush1.msra.mxu0 0.0
    %183 = vmatprep.subr.mxu0 0.0
    %184 = vmatpush1.msra.mxu0 0.0
    %185 = vmatprep.subr.mxu0 0.0
    %186 = vmatpush1.msra.mxu0 0.0
    %187 = vmatprep.subr.mxu0 0.0
    %188 = vmatpush1.msra.mxu0 0.0
    %189 = vmatprep.subr.mxu0 0.0
    %190 = vmatpush1.msra.mxu0 0.0
    %191 = vmatprep.subr.mxu0 0.0
    %192 = vmatpush1.msra.mxu0 0.0
    %193 = vmatprep.subr.mxu0 0.0
    %194 = vmatpush1.msra.mxu0 0.0
    %195 = vmatprep.subr.mxu0 0.0
    %196 = vmatpush1.msra.mxu0 %v165
    %197 = vmatprep.subr.mxu0 0.0
    %198 = vmatpush1.msra.mxu0 %v154
    %199 = vmatprep.subr.mxu0 0.0
    %200 = vmatpush2.msra.mxu0 0.0
    %201 = vmatprep.subr.mxu0 0.0
    %202 = vmatpush2.msra.mxu0 0.0
    %203 = vmatprep.subr.mxu0 0.0
    %204 = vmatpush2.msra.mxu0 0.0
    %205 = vmatprep.subr.mxu0 0.0
    %206 = vmatpush2.msra.mxu0 0.0
    %207 = vmatprep.subr.mxu0 0.0
    %208 = vmatpush2.msra.mxu0 0.0
    %209 = vmatprep.subr.mxu0 0.0
    %210 = vmatpush2.msra.mxu0 0.0
    %211 = vmatprep.subr.mxu0 0.0
    %212 = vmatpush2.msra.mxu0 0.0
    %213 = vmatprep.subr.mxu0 0.0
    %214 = vmatpush2.msra.mxu0 0.0
    %215 = vmatprep.subr.mxu0 0.0
    %216 = vmatpush2.msra.mxu0 0.0
    %217 = vmatprep.subr.mxu0 0.0
    %218 = vmatpush2.msra.mxu0 0.0
    %219 = vmatprep.subr.mxu0 0.0
    %220 = vmatpush2.msra.mxu0 0.0
    %221 = vmatprep.subr.mxu0 0.0
    %222 = vmatpush2.msra.mxu0 0.0
    %223 = vmatprep.subr.mxu0 0.0
    %224 = vmatpush2.msra.mxu0 0.0
    %225 = vmatprep.subr.mxu0 0.0
    %226 = vmatpush2.msra.mxu0 0.0
    %227 = vmatprep.subr.mxu0 0.0
    %228 = vmatpush2.msra.mxu0 0.0
    %229 = vmatprep.subr.mxu0 0.0
    %230 = vmatpush2.msra.mxu0 0.0
    %231 = vmatprep.mubr.f32.mxu0 0.0
    %232 = vmatmul.mubr.f32.gmra.mxu0 %v158
    %v233 = vpop.f32.mrf.mxu0
    %v234 = vadd.f32 0.0, %v233
    %v235 = vpop.f32.mrf.mxu0
    %236 = vmatprep.mubr.f32.mxu0 0.0
    %237 = vmatmul.mubr.f32.gmra.mxu0 %v161
    %v238 = vpop.f32.mrf.mxu0
    %v239 = vadd.f32 0.0, %v238
    %v240 = vpop.f32.mrf.mxu0
    %241 = vdwg.mxu0
    %v243 = vsel %vm41, %v35, 0
    %v246 = vsel %vm41, %v36, 0
    %248 = vmatprep.subr.mxu0 0.0
    %249 = vmatpush1.msra.mxu0 0.0
    %250 = vmatprep.subr.mxu0 0.0
    %251 = vmatpush1.msra.mxu0 0.0
    %252 = vmatprep.subr.mxu0 0.0
    %253 = vmatpush1.msra.mxu0 0.0
    %254 = vmatprep.subr.mxu0 0.0
    %255 = vmatpush1.msra.mxu0 0.0
    %256 = vmatprep.subr.mxu0 0.0
    %257 = vmatpush1.msra.mxu0 0.0
    %258 = vmatprep.subr.mxu0 0.0
    %259 = vmatpush1.msra.mxu0 0.0
    %260 = vmatprep.subr.mxu0 0.0
    %261 = vmatpush1.msra.mxu0 0.0
    %262 = vmatprep.subr.mxu0 0.0
    %263 = vmatpush1.msra.mxu0 0.0
    %264 = vmatprep.subr.mxu0 0.0
    %265 = vmatpush1.msra.mxu0 0.0
    %266 = vmatprep.subr.mxu0 0.0
    %267 = vmatpush1.msra.mxu0 0.0
    %268 = vmatprep.subr.mxu0 0.0
    %269 = vmatpush1.msra.mxu0 0.0
    %270 = vmatprep.subr.mxu0 0.0
    %271 = vmatpush1.msra.mxu0 0.0
    %272 = vmatprep.subr.mxu0 0.0
    %273 = vmatpush1.msra.mxu0 %v40
    %274 = vmatprep.subr.mxu0 0.0
    %275 = vmatpush1.msra.mxu0 %v39
    %276 = vmatprep.subr.mxu0 0.0
    %277 = vmatpush1.msra.mxu0 %v38
    %278 = vmatprep.subr.mxu0 0.0
    %279 = vmatpush1.msra.mxu0 %v37
    %280 = vmatprep.subr.mxu0 0.0
    %281 = vmatpush2.msra.mxu0 0.0
    %282 = vmatprep.subr.mxu0 0.0
    %283 = vmatpush2.msra.mxu0 0.0
    %284 = vmatprep.subr.mxu0 0.0
    %285 = vmatpush2.msra.mxu0 0.0
    %286 = vmatprep.subr.mxu0 0.0
    %287 = vmatpush2.msra.mxu0 0.0
    %288 = vmatprep.subr.mxu0 0.0
    %289 = vmatpush2.msra.mxu0 0.0
    %290 = vmatprep.subr.mxu0 0.0
    %291 = vmatpush2.msra.mxu0 0.0
    %292 = vmatprep.subr.mxu0 0.0
    %293 = vmatpush2.msra.mxu0 0.0
    %294 = vmatprep.subr.mxu0 0.0
    %295 = vmatpush2.msra.mxu0 0.0
    %296 = vmatprep.subr.mxu0 0.0
    %297 = vmatpush2.msra.mxu0 0.0
    %298 = vmatprep.subr.mxu0 0.0
    %299 = vmatpush2.msra.mxu0 0.0
    %300 = vmatprep.subr.mxu0 0.0
    %301 = vmatpush2.msra.mxu0 0.0
    %302 = vmatprep.subr.mxu0 0.0
    %303 = vmatpush2.msra.mxu0 0.0
    %304 = vmatprep.subr.mxu0 0.0
    %305 = vmatpush2.msra.mxu0 0.0
    %306 = vmatprep.subr.mxu0 0.0
    %307 = vmatpush2.msra.mxu0 0.0
    %308 = vmatprep.subr.mxu0 0.0
    %309 = vmatpush2.msra.mxu0 0.0
    %310 = vmatprep.subr.mxu0 0.0
    %311 = vmatpush2.msra.mxu0 0.0
    %312 = vmatprep.mubr.f32.mxu0 0.0
    %313 = vmatmul.mubr.f32.gmra.mxu0 %v243
    %v314 = vpop.f32.mrf.mxu0
    %v315 = vadd.f32 %v234, %v314
    %v316 = vpop.f32.mrf.mxu0
    %317 = vmatprep.mubr.f32.mxu0 0.0
    %318 = vmatmul.mubr.f32.gmra.mxu0 %v246
    %v319 = vpop.f32.mrf.mxu0
    %v320 = vadd.f32 %v239, %v319
    %v321 = vpop.f32.mrf.mxu0
    %322 = vdwg.mxu0
    %v323 = vld [vmem:[%s2] sm:$0x1]
    %v325 = vlaneseq
    %v326 = vshrl.u32 %v325, 7
    %v327 = vsub.s32 0, %v326
    %v328 = vrot.slane %v323, %v327
    %v330 = vadd.f32 %v315, %v328
    %v331 = vadd.f32 %v320, %v328
    %vm332 = vcmask 785408
    %333 = vst.msk [vmem:[#allocation5] sm:$0xff] %vm332, %v330
    %334 = vst.msk [vmem:[#allocation5 + $0x8] sm:$0xff] %vm332, %v331
    // Predicated region
    $region26: #{tpu_custom_call.1} parent=1 // pred_check
      _
    $region27: #{tpu_custom_call.1} parent=1 // pred_check_branch
      %336 = sbr.rel (0) target = $region29
    $region28: #{tpu_custom_call.1} parent=1 // pred_region
      %s338 = ssub.s32 256, 256
      %339 = vsyncadd [#allocation4], %s338
      %s340 = sshll.u32 [#allocation5], 4
      %s341 = int_to_ptr.vmem [resolvable:$true] %s340
      %346 = dma.vmem_to_hbm [thread:$0]  %s341, 256, %s5, [#allocation4], 128, 128, 8
    $region29: #{tpu_custom_call.1} parent=1 // pred_fallthru
      _
    // Predicated region
    $region30: #{tpu_custom_call.1} parent=1 // pred_check
      _
    $region31: #{tpu_custom_call.1} parent=1 // pred_check_branch
      %348 = sbr.rel (0) target = $region33
    $region32: #{tpu_custom_call.1} parent=1 // pred_region
      %349 = dma.done [#allocation4], 256
    $region33: #{tpu_custom_call.1} parent=1 // pred_fallthru
      _
    %350 = vsyncpa [#allocation3], 1
    %351 = vsyncpa [#allocation4], 1

// kernel: tpu_custom_call.1
$region0: #{tpu_custom_call.1}
  #allocation0 [shape = 'u32[]', space=smem, size = 0x4, offset = 0x4, fixed_abs, tag = 'smem constant byte address 0x4 - core index']
  #allocation1 [shape = 'u32[144,128]{1,0:T(1,128)}', space=vmem, size = 0x12000, scoped, tag = 'internal scratch']
  %s0 = inlined_call_operand.vmem [shape: f32[16,32], index: 0, kind: input, shape index: {}]
  %s1 = inlined_call_operand.vmem [shape: f32[32,96], index: 1, kind: input, shape index: {}]
  %s2 = inlined_call_operand.vmem [shape: f32[1,96], index: 2, kind: input, shape index: {}]
  %s3 = inlined_call_operand.vmem [shape: f32[32,12], index: 3, kind: input, shape index: {}]
  %s4 = inlined_call_operand.hbm [shape: f32[12,96], index: 4, kind: input, shape index: {}]
  %s5 = inlined_call_operand.hbm [shape: f32[16,96], index: 5, kind: output, shape index: {}]
  %s6 = sld [smem:[#allocation0]]
  $region34: #{tpu_custom_call.1} parent=0
    _
  %s8 = ssub.s32 1, %s6
  %s9 = scalar_select 0, %s8, %s6
  $region1: #{tpu_custom_call.1} parent=0
    #allocation2 [shape = 'u8[8192]{0}', space=vmem, size = 0x2000, scoped, tag = 'input window, operand 4, single buffered']
    #allocation3 [shape = 's32[1]{0}', space=sflag, size = 0x4, scoped, tag = 'scoped memory for tpu_custom_call.1']
    #allocation4 [shape = 's32[1]{0}', space=sflag, size = 0x4, scoped, tag = 'scoped memory for tpu_custom_call.1']
    #allocation5 [shape = 'u8[8192]{0}', space=vmem, size = 0x2000, scoped, tag = 'output window, operand 0, single buffered']
    %10 = vsyncpa [#allocation3], 0
    %11 = vsyncpa [#allocation4], 0
    // Predicated region
    $region2: #{tpu_custom_call.1} parent=1 // pred_check
      _
    $region3: #{tpu_custom_call.1} parent=1 // pred_check_branch
      %13 = sbr.rel (0) target = $region5
    $region4: #{tpu_custom_call.1} parent=1 // pred_region
      _
    $region5: #{tpu_custom_call.1} parent=1 // pred_fallthru
      _
    // Predicated region
    $region6: #{tpu_custom_call.1} parent=1 // pred_check
      _
    $region7: #{tpu_custom_call.1} parent=1 // pred_check_branch
      %15 = sbr.rel (0) target = $region9
    $region8: #{tpu_custom_call.1} parent=1 // pred_region
      _
    $region9: #{tpu_custom_call.1} parent=1 // pred_fallthru
      _
    // Predicated region
    $region10: #{tpu_custom_call.1} parent=1 // pred_check
      _
    $region11: #{tpu_custom_call.1} parent=1 // pred_check_branch
      %17 = sbr.rel (0) target = $region13
    $region12: #{tpu_custom_call.1} parent=1 // pred_region
      _
    $region13: #{tpu_custom_call.1} parent=1 // pred_fallthru
      _
    // Predicated region
    $region14: #{tpu_custom_call.1} parent=1 // pred_check
      _
    $region15: #{tpu_custom_call.1} parent=1 // pred_check_branch
      %19 = sbr.rel (0) target = $region17
    $region16: #{tpu_custom_call.1} parent=1 // pred_region
      _
    $region17: #{tpu_custom_call.1} parent=1 // pred_fallthru
      _
    // Predicated region
    $region18: #{tpu_custom_call.1} parent=1 // pred_check
      _
    $region19: #{tpu_custom_call.1} parent=1 // pred_check_branch
      %21 = sbr.rel (0) target = $region21
    $region20: #{tpu_custom_call.1} parent=1 // pred_region
      %s23 = ssub.s32 256, 256
      %24 = vsyncadd [#allocation3], %s23
      %s25 = sshll.u32 [#allocation2], 4
      %s26 = int_to_ptr.vmem [resolvable:$true] %s25
      %31 = dma.hbm_to_vmem [thread:$0]  %s4, 256, %s26, [#allocation3], 128, 128, 8
    $region21: #{tpu_custom_call.1} parent=1 // pred_fallthru
      _
    // Predicated region
    $region22: #{tpu_custom_call.1} parent=1 // pred_check
      _
    $region23: #{tpu_custom_call.1} parent=1 // pred_check_branch
      %33 = sbr.rel (0) target = $region25
    $region24: #{tpu_custom_call.1} parent=1 // pred_region
      %34 = dma.done [#allocation3], 256
    $region25: #{tpu_custom_call.1} parent=1 // pred_fallthru
      _
    %v35 = vld [vmem:[%s0] sm:$0xff]
    %v36 = vld [vmem:[%s0 + $0x8] sm:$0xff]
    %v37 = vld [vmem:[%s1] sm:$0xff]
    %v38 = vld [vmem:[%s1 + $0x8] sm:$0xff]
    %v39 = vld [vmem:[%s1 + $0x10] sm:$0xff]
    %v40 = vld [vmem:[%s1 + $0x18] sm:$0xff]
    %vm41 = vcmask 261120
    %v42 = vsel %vm41, %v35, 0.0
    %43 = vadd.xlane.f32.xlu0 %v42
    %v44 = vpop.xlane.xlu0 %43
    %v45 = vsel %vm41, %v36, 0.0
    %46 = vadd.xlane.f32.xlu0 %v45
    %v47 = vpop.xlane.xlu0 %46
    %v48 = vrcp.pop 32.0
    %v49 = vmul.f32 %v44, %v48
    %v50 = vmul.f32 %v47, %v48
    %v51 = vsub.f32 %v35, %v49
    %v52 = vsub.f32 %v36, %v50
    %v53 = vmul.f32 %v51, %v51
    %v54 = vmul.f32 %v52, %v52
    %v55 = vsel %vm41, %v53, 0.0
    %56 = vadd.xlane.f32.xlu0 %v55
    %v57 = vpop.xlane.xlu0 %56
    %v58 = vsel %vm41, %v54, 0.0
    %59 = vadd.xlane.f32.xlu0 %v58
    %v60 = vpop.xlane.xlu0 %59
    %v61 = vmul.f32 %v57, %v48
    %v62 = vmul.f32 %v60, %v48
    %v63 = vadd.f32 %v61, 1e-05
    %v64 = vadd.f32 %v62, 1e-05
    %v65 = vrsqrt.pop %v63
    %v66 = vrsqrt.pop %v64
    %v67 = vmul.f32 %v51, %v65
    %v68 = vmul.f32 %v52, %v66
    %v69 = vld [vmem:[%s3] sm:$0xff]
    %v70 = vld [vmem:[%s3 + $0x8] sm:$0xff]
    %v71 = vld [vmem:[%s3 + $0x10] sm:$0xff]
    %v72 = vld [vmem:[%s3 + $0x18] sm:$0xff]
    %v74 = vsel %vm41, %v67, 0
    %v77 = vsel %vm41, %v68, 0
    %79 = vmatprep.subr.mxu0 0.0
    %80 = vmatpush1.msra.mxu0 0.0
    %81 = vmatprep.subr.mxu0 0.0
    %82 = vmatpush1.msra.mxu0 0.0
    %83 = vmatprep.subr.mxu0 0.0
    %84 = vmatpush1.msra.mxu0 0.0
    %85 = vmatprep.subr.mxu0 0.0
    %86 = vmatpush1.msra.mxu0 0.0
    %87 = vmatprep.subr.mxu0 0.0
    %88 = vmatpush1.msra.mxu0 0.0
    %89 = vmatprep.subr.mxu0 0.0
    %90 = vmatpush1.msra.mxu0 0.0
    %91 = vmatprep.subr.mxu0 0.0
    %92 = vmatpush1.msra.mxu0 0.0
    %93 = vmatprep.subr.mxu0 0.0
    %94 = vmatpush1.msra.mxu0 0.0
    %95 = vmatprep.subr.mxu0 0.0
    %96 = vmatpush1.msra.mxu0 0.0
    %97 = vmatprep.subr.mxu0 0.0
    %98 = vmatpush1.msra.mxu0 0.0
    %99 = vmatprep.subr.mxu0 0.0
    %100 = vmatpush1.msra.mxu0 0.0
    %101 = vmatprep.subr.mxu0 0.0
    %102 = vmatpush1.msra.mxu0 0.0
    %103 = vmatprep.subr.mxu0 0.0
    %104 = vmatpush1.msra.mxu0 %v72
    %105 = vmatprep.subr.mxu0 0.0
    %106 = vmatpush1.msra.mxu0 %v71
    %107 = vmatprep.subr.mxu0 0.0
    %108 = vmatpush1.msra.mxu0 %v70
    %109 = vmatprep.subr.mxu0 0.0
    %110 = vmatpush1.msra.mxu0 %v69
    %111 = vmatprep.subr.mxu0 0.0
    %112 = vmatpush2.msra.mxu0 0.0
    %113 = vmatprep.subr.mxu0 0.0
    %114 = vmatpush2.msra.mxu0 0.0
    %115 = vmatprep.subr.mxu0 0.0
    %116 = vmatpush2.msra.mxu0 0.0
    %117 = vmatprep.subr.mxu0 0.0
    %118 = vmatpush2.msra.mxu0 0.0
    %119 = vmatprep.subr.mxu0 0.0
    %120 = vmatpush2.msra.mxu0 0.0
    %121 = vmatprep.subr.mxu0 0.0
    %122 = vmatpush2.msra.mxu0 0.0
    %123 = vmatprep.subr.mxu0 0.0
    %124 = vmatpush2.msra.mxu0 0.0
    %125 = vmatprep.subr.mxu0 0.0
    %126 = vmatpush2.msra.mxu0 0.0
    %127 = vmatprep.subr.mxu0 0.0
    %128 = vmatpush2.msra.mxu0 0.0
    %129 = vmatprep.subr.mxu0 0.0
    %130 = vmatpush2.msra.mxu0 0.0
    %131 = vmatprep.subr.mxu0 0.0
    %132 = vmatpush2.msra.mxu0 0.0
    %133 = vmatprep.subr.mxu0 0.0
    %134 = vmatpush2.msra.mxu0 0.0
    %135 = vmatprep.subr.mxu0 0.0
    %136 = vmatpush2.msra.mxu0 0.0
    %137 = vmatprep.subr.mxu0 0.0
    %138 = vmatpush2.msra.mxu0 0.0
    %139 = vmatprep.subr.mxu0 0.0
    %140 = vmatpush2.msra.mxu0 0.0
    %141 = vmatprep.subr.mxu0 0.0
    %142 = vmatpush2.msra.mxu0 0.0
    %143 = vmatprep.mubr.f32.mxu0 0.0
    %144 = vmatmul.mubr.f32.gmra.mxu0 %v74
    %v145 = vpop.f32.mrf.mxu0
    %v146 = vadd.f32 0.0, %v145
    %v147 = vpop.f32.mrf.mxu0
    %148 = vmatprep.mubr.f32.mxu0 0.0
    %149 = vmatmul.mubr.f32.gmra.mxu0 %v77
    %v150 = vpop.f32.mrf.mxu0
    %v151 = vadd.f32 0.0, %v150
    %v152 = vpop.f32.mrf.mxu0
    %153 = vdwg.mxu0
    %v154 = vld [vmem:[#allocation2] sm:$0xff]
    %v155 = vld [vmem:[#allocation2 + $0x8] sm:$0xf]
    %vm156 = vcmask 97280
    %v158 = vsel %vm156, %v146, 0
    %v161 = vsel %vm156, %v151, 0
    %vm163 = vcmask 1043456
    %v165 = vsel %vm163, %v155, 0
    %167 = vmatprep.subr.mxu0 0.0
    %168 = vmatpush1.msra.mxu0 0.0
    %169 = vmatprep.subr.mxu0 0.0
    %170 = vmatpush1.msra.mxu0 0.0
    %171 = vmatprep.subr.mxu0 0.0
    %172 = vmatpush1.msra.mxu0 0.0
    %173 = vmatprep.subr.mxu0 0.0
    %174 = vmatpush1.msra.mxu0 0.0
    %175 = vmatprep.subr.mxu0 0.0
    %176 = vmatpush1.msra.mxu0 0.0
    %177 = vmatprep.subr.mxu0 0.0
    %178 = vmatpush1.msra.mxu0 0.0
    %179 = vmatprep.subr.mxu0 0.0
    %180 = vmatpush1.msra.mxu0 0.0
    %181 = vmatprep.subr.mxu0 0.0
    %182 = vmatpush1.msra.mxu0 0.0
    %183 = vmatprep.subr.mxu0 0.0
    %184 = vmatpush1.msra.mxu0 0.0
    %185 = vmatprep.subr.mxu0 0.0
    %186 = vmatpush1.msra.mxu0 0.0
    %187 = vmatprep.subr.mxu0 0.0
    %188 = vmatpush1.msra.mxu0 0.0
    %189 = vmatprep.subr.mxu0 0.0
    %190 = vmatpush1.msra.mxu0 0.0
    %191 = vmatprep.subr.mxu0 0.0
    %192 = vmatpush1.msra.mxu0 0.0
    %193 = vmatprep.subr.mxu0 0.0
    %194 = vmatpush1.msra.mxu0 0.0
    %195 = vmatprep.subr.mxu0 0.0
    %196 = vmatpush1.msra.mxu0 %v165
    %197 = vmatprep.subr.mxu0 0.0
    %198 = vmatpush1.msra.mxu0 %v154
    %199 = vmatprep.subr.mxu0 0.0
    %200 = vmatpush2.msra.mxu0 0.0
    %201 = vmatprep.subr.mxu0 0.0
    %202 = vmatpush2.msra.mxu0 0.0
    %203 = vmatprep.subr.mxu0 0.0
    %204 = vmatpush2.msra.mxu0 0.0
    %205 = vmatprep.subr.mxu0 0.0
    %206 = vmatpush2.msra.mxu0 0.0
    %207 = vmatprep.subr.mxu0 0.0
    %208 = vmatpush2.msra.mxu0 0.0
    %209 = vmatprep.subr.mxu0 0.0
    %210 = vmatpush2.msra.mxu0 0.0
    %211 = vmatprep.subr.mxu0 0.0
    %212 = vmatpush2.msra.mxu0 0.0
    %213 = vmatprep.subr.mxu0 0.0
    %214 = vmatpush2.msra.mxu0 0.0
    %215 = vmatprep.subr.mxu0 0.0
    %216 = vmatpush2.msra.mxu0 0.0
    %217 = vmatprep.subr.mxu0 0.0
    %218 = vmatpush2.msra.mxu0 0.0
    %219 = vmatprep.subr.mxu0 0.0
    %220 = vmatpush2.msra.mxu0 0.0
    %221 = vmatprep.subr.mxu0 0.0
    %222 = vmatpush2.msra.mxu0 0.0
    %223 = vmatprep.subr.mxu0 0.0
    %224 = vmatpush2.msra.mxu0 0.0
    %225 = vmatprep.subr.mxu0 0.0
    %226 = vmatpush2.msra.mxu0 0.0
    %227 = vmatprep.subr.mxu0 0.0
    %228 = vmatpush2.msra.mxu0 0.0
    %229 = vmatprep.subr.mxu0 0.0
    %230 = vmatpush2.msra.mxu0 0.0
    %231 = vmatprep.mubr.f32.mxu0 0.0
    %232 = vmatmul.mubr.f32.gmra.mxu0 %v158
    %v233 = vpop.f32.mrf.mxu0
    %v234 = vadd.f32 0.0, %v233
    %v235 = vpop.f32.mrf.mxu0
    %236 = vmatprep.mubr.f32.mxu0 0.0
    %237 = vmatmul.mubr.f32.gmra.mxu0 %v161
    %v238 = vpop.f32.mrf.mxu0
    %v239 = vadd.f32 0.0, %v238
    %v240 = vpop.f32.mrf.mxu0
    %241 = vdwg.mxu0
    %v243 = vsel %vm41, %v35, 0
    %v246 = vsel %vm41, %v36, 0
    %248 = vmatprep.subr.mxu0 0.0
    %249 = vmatpush1.msra.mxu0 0.0
    %250 = vmatprep.subr.mxu0 0.0
    %251 = vmatpush1.msra.mxu0 0.0
    %252 = vmatprep.subr.mxu0 0.0
    %253 = vmatpush1.msra.mxu0 0.0
    %254 = vmatprep.subr.mxu0 0.0
    %255 = vmatpush1.msra.mxu0 0.0
    %256 = vmatprep.subr.mxu0 0.0
    %257 = vmatpush1.msra.mxu0 0.0
    %258 = vmatprep.subr.mxu0 0.0
    %259 = vmatpush1.msra.mxu0 0.0
    %260 = vmatprep.subr.mxu0 0.0
    %261 = vmatpush1.msra.mxu0 0.0
    %262 = vmatprep.subr.mxu0 0.0
    %263 = vmatpush1.msra.mxu0 0.0
    %264 = vmatprep.subr.mxu0 0.0
    %265 = vmatpush1.msra.mxu0 0.0
    %266 = vmatprep.subr.mxu0 0.0
    %267 = vmatpush1.msra.mxu0 0.0
    %268 = vmatprep.subr.mxu0 0.0
    %269 = vmatpush1.msra.mxu0 0.0
    %270 = vmatprep.subr.mxu0 0.0
    %271 = vmatpush1.msra.mxu0 0.0
    %272 = vmatprep.subr.mxu0 0.0
    %273 = vmatpush1.msra.mxu0 %v40
    %274 = vmatprep.subr.mxu0 0.0
    %275 = vmatpush1.msra.mxu0 %v39
    %276 = vmatprep.subr.mxu0 0.0
    %277 = vmatpush1.msra.mxu0 %v38
    %278 = vmatprep.subr.mxu0 0.0
    %279 = vmatpush1.msra.mxu0 %v37
    %280 = vmatprep.subr.mxu0 0.0
    %281 = vmatpush2.msra.mxu0 0.0
    %282 = vmatprep.subr.mxu0 0.0
    %283 = vmatpush2.msra.mxu0 0.0
    %284 = vmatprep.subr.mxu0 0.0
    %285 = vmatpush2.msra.mxu0 0.0
    %286 = vmatprep.subr.mxu0 0.0
    %287 = vmatpush2.msra.mxu0 0.0
    %288 = vmatprep.subr.mxu0 0.0
    %289 = vmatpush2.msra.mxu0 0.0
    %290 = vmatprep.subr.mxu0 0.0
    %291 = vmatpush2.msra.mxu0 0.0
    %292 = vmatprep.subr.mxu0 0.0
    %293 = vmatpush2.msra.mxu0 0.0
    %294 = vmatprep.subr.mxu0 0.0
    %295 = vmatpush2.msra.mxu0 0.0
    %296 = vmatprep.subr.mxu0 0.0
    %297 = vmatpush2.msra.mxu0 0.0
    %298 = vmatprep.subr.mxu0 0.0
    %299 = vmatpush2.msra.mxu0 0.0
    %300 = vmatprep.subr.mxu0 0.0
    %301 = vmatpush2.msra.mxu0 0.0
    %302 = vmatprep.subr.mxu0 0.0
    %303 = vmatpush2.msra.mxu0 0.0
    %304 = vmatprep.subr.mxu0 0.0
    %305 = vmatpush2.msra.mxu0 0.0
    %306 = vmatprep.subr.mxu0 0.0
    %307 = vmatpush2.msra.mxu0 0.0
    %308 = vmatprep.subr.mxu0 0.0
    %309 = vmatpush2.msra.mxu0 0.0
    %310 = vmatprep.subr.mxu0 0.0
    %311 = vmatpush2.msra.mxu0 0.0
    %312 = vmatprep.mubr.f32.mxu0 0.0
    %313 = vmatmul.mubr.f32.gmra.mxu0 %v243
    %v314 = vpop.f32.mrf.mxu0
    %v315 = vadd.f32 %v234, %v314
    %v316 = vpop.f32.mrf.mxu0
    %317 = vmatprep.mubr.f32.mxu0 0.0
    %318 = vmatmul.mubr.f32.gmra.mxu0 %v246
    %v319 = vpop.f32.mrf.mxu0
    %v320 = vadd.f32 %v239, %v319
    %v321 = vpop.f32.mrf.mxu0
    %322 = vdwg.mxu0
    %v323 = vld [vmem:[%s2] sm:$0x1]
    %v325 = vlaneseq
    %v326 = vshrl.u32 %v325, 7
    %v327 = vsub.s32 0, %v326
    %v328 = vrot.slane %v323, %v327
    %v330 = vadd.f32 %v315, %v328
    %v331 = vadd.f32 %v320, %v328
    %vm332 = vcmask 785408
    %333 = vst.msk [vmem:[#allocation5] sm:$0xff] %vm332, %v330
    %334 = vst.msk [vmem:[#allocation5 + $0x8] sm:$0xff] %vm332, %v331
    // Predicated region
    $region26: #{tpu_custom_call.1} parent=1 // pred_check
      _
    $region27: #{tpu_custom_call.1} parent=1 // pred_check_branch
      %336 = sbr.rel (0) target = $region29
    $region28: #{tpu_custom_call.1} parent=1 // pred_region
      %s338 = ssub.s32 256, 256
      %339 = vsyncadd [#allocation4], %s338
      %s340 = sshll.u32 [#allocation5], 4
      %s341 = int_to_ptr.vmem [resolvable:$true] %s340
      %346 = dma.vmem_to_hbm [thread:$0]  %s341, 256, %s5, [#allocation4], 128, 128, 8
    $region29: #{tpu_custom_call.1} parent=1 // pred_fallthru
      _
    // Predicated region
    $region30: #{tpu_custom_call.1} parent=1 // pred_check
      _
    $region31: #{tpu_custom_call.1} parent=1 // pred_check_branch
      %348 = sbr.rel (0) target = $region33
    $region32: #{tpu_custom_call.1} parent=1 // pred_region
      %349 = dma.done [#allocation4], 256
    $region33: #{tpu_custom_call.1} parent=1 // pred_fallthru
      _
    %350 = vsyncpa [#allocation3], 1
    %351 = vsyncpa [#allocation4], 1

</llo_original>
